<compile_context>
chip_gen: v7x
topology: tpu7x:2x2x1
jax: 0.10.0
libtpu: 0.0.40
codegen_flags: <defaults>
</compile_context>

<pallas_src>
import functools

import jax
import jax.numpy as jnp
from jax.experimental import pallas as pl
from jax.experimental.pallas import tpu as pltpu


def _mha_kernel(x_ref, wqkv_ref, bqkv_ref, wo_ref, bo_ref, o_ref, *,
                num_heads, head_dim, approx_recip):
    C = num_heads * head_dim
    compute_dtype = x_ref.dtype

    x = x_ref[0]                                                   # (T, C)

    # Fused Q/K/V projection: single (T, C) @ (C, 3C) MXU matmul, f32 accumulate.
    qkv = jnp.dot(x, wqkv_ref[...], preferred_element_type=jnp.float32)
    qkv = qkv + bqkv_ref[...]                                      # (T, 3C) f32
    qkv_lp = qkv.astype(compute_dtype)                             # MXU input dtype

    scale = 1.0 / (float(head_dim) ** 0.5)
    contract_last = (((1,), (1,)), ((), ()))                       # q @ k^T without XLU transpose

    head_outs = []
    for h in range(num_heads):                                     # small H -> fully unrolled
        lo = h * head_dim
        q = qkv_lp[:, lo:lo + head_dim]                            # (T, hd)
        k = qkv_lp[:, C + lo:C + lo + head_dim]                    # (T, hd)
        v = qkv_lp[:, 2 * C + lo:2 * C + lo + head_dim]            # (T, hd)

        s = jax.lax.dot_general(q, k, contract_last,
                                preferred_element_type=jnp.float32) * scale   # (T, T) f32
        m = jnp.max(s, axis=-1, keepdims=True)
        p = jnp.exp(s - m)
        denom = jnp.sum(p, axis=-1, keepdims=True)
        attn = p * pl.reciprocal(denom, approx=approx_recip)       # stable softmax, f32
        head_outs.append(
            jnp.dot(attn.astype(compute_dtype), v,
                    preferred_element_type=jnp.float32))           # (T, hd) f32

    attn_cat = jnp.concatenate(head_outs, axis=-1)                 # (T, C) f32

    # Single output projection across all heads: (T, C) @ (C, C).
    out = jnp.dot(attn_cat.astype(compute_dtype), wo_ref[...],
                  preferred_element_type=jnp.float32) + bo_ref[...]
    o_ref[0] = out.astype(o_ref.dtype)


def multi_head_attention(x, w_qkv, b_qkv, w_out, b_out, num_heads,
                         mask=None, compute_dtype=jnp.bfloat16):
    """x: (B, T, C).  Weights follow nn.Linear conventions:
       w_qkv: (3C, C), b_qkv: (3C,), w_out: (C, C), b_out: (C,)."""
    if mask is not None:
        # TODO(synk): optional attention mask not implemented.
        raise NotImplementedError("mask is not supported")

    B, T, C = x.shape
    H = num_heads
    assert C % H == 0
    hd = C // H

    # --- wrapper glue: regroup/pre-transpose weights so the kernel never transposes ---
    # Rows of w_qkv are ordered [head, (q|k|v), hd] per the PyTorch reshape/permute/chunk.
    w_r = w_qkv.reshape(H, 3, hd, C)
    b_r = b_qkv.reshape(H, 3, hd)
    # (C, 3C): output columns are [Q(all heads) | K(all heads) | V(all heads)],
    # each group ordered (head, dim) so per-head slices are contiguous.
    wqkv_t = jnp.concatenate(
        [w_r[:, 0].reshape(C, C), w_r[:, 1].reshape(C, C), w_r[:, 2].reshape(C, C)],
        axis=0).T
    bqkv_t = jnp.concatenate(
        [b_r[:, 0].reshape(C), b_r[:, 1].reshape(C), b_r[:, 2].reshape(C)]).reshape(1, 3 * C)
    wo_t = w_out.T                        # (C, C): out = attn_cat @ w_out.T + b_out
    bo = b_out.reshape(1, C)

    # Matmul operands in compute dtype (bf16 by default), biases stay f32.
    x_c = x.astype(compute_dtype)
    wqkv_t = wqkv_t.astype(compute_dtype)
    wo_t = wo_t.astype(compute_dtype)
    bqkv_t = bqkv_t.astype(jnp.float32)
    bo = bo.astype(jnp.float32)

    kernel = functools.partial(
        _mha_kernel, num_heads=H, head_dim=hd,
        approx_recip=(compute_dtype != jnp.float32))

    return pl.pallas_call(
        kernel,
        out_shape=jax.ShapeDtypeStruct((B, T, C), x.dtype),
        grid_spec=pltpu.PrefetchScalarGridSpec(
            num_scalar_prefetch=0,
            grid=(B,),
            in_specs=[
                pl.BlockSpec((1, T, C), lambda b: (b, 0, 0)),        # x (per-batch tile)
                pl.BlockSpec((C, 3 * C), lambda b: (0, 0)),          # fused QKV weight (pre-T)
                pl.BlockSpec((1, 3 * C), lambda b: (0, 0)),          # fused QKV bias
                pl.BlockSpec((C, C), lambda b: (0, 0)),              # out-proj weight (pre-T)
                pl.BlockSpec((1, C), lambda b: (0, 0)),              # out-proj bias
            ],
            out_specs=pl.BlockSpec((1, T, C), lambda b: (b, 0, 0)),
        ),
        compiler_params=pltpu.CompilerParams(
            dimension_semantics=("parallel",)),                      # shards batch across TCs on v7x
    )(x_c, wqkv_t, bqkv_t, wo_t, bo)


def _reference(x, w_qkv, b_qkv, w_out, b_out, num_heads):
    B, T, C = x.shape
    hd = C // num_heads
    qkv = x @ w_qkv.T + b_qkv                             # (B, T, 3C)
    qkv = qkv.reshape(B, T, num_heads, 3 * hd).transpose(0, 2, 1, 3)
    q, k, v = qkv[..., :hd], qkv[..., hd:2 * hd], qkv[..., 2 * hd:]
    scores = (q @ jnp.swapaxes(k, -2, -1)) / (hd ** 0.5)
    w = jax.nn.softmax(scores, axis=-1)
    out = w @ v                                           # (B, H, T, hd)
    out = out.transpose(0, 2, 1, 3).reshape(B, T, C)
    return out @ w_out.T + b_out


if __name__ == "__main__":
    B, T, C, H = 2, 8, 32, 4

    key = jax.random.PRNGKey(0)
    kx, kw1, kb1, kw2, kb2 = jax.random.split(key, 5)
    x = jax.random.normal(kx, (B, T, C), dtype=jnp.float32)
    # Deterministic nn.Linear-shaped parameters.
    w_qkv = jax.random.normal(kw1, (3 * C, C), dtype=jnp.float32) * 0.1
    b_qkv = jax.random.normal(kb1, (3 * C,), dtype=jnp.float32) * 0.1
    w_out = jax.random.normal(kw2, (C, C), dtype=jnp.float32) * 0.1
    b_out = jax.random.normal(kb2, (C,), dtype=jnp.float32) * 0.1

    ref = _reference(x, w_qkv, b_qkv, w_out, b_out, H)

    # f32 compute path: tight check against the pure-JAX reference.
    out_f32 = jax.block_until_ready(
        multi_head_attention(x, w_qkv, b_qkv, w_out, b_out, H,
                             compute_dtype=jnp.float32))
    assert out_f32.shape == (B, T, C)
    assert jnp.allclose(out_f32, ref, atol=1e-4, rtol=1e-4), "f32 mismatch vs reference"

    # bf16 fast path (default, MXU-friendly): looser tolerance for bf16 operands.
    out_bf16 = jax.block_until_ready(
        multi_head_attention(x, w_qkv, b_qkv, w_out, b_out, H))
    assert out_bf16.shape == (B, T, C)
    assert jnp.allclose(out_bf16, ref, atol=5e-2, rtol=5e-2), "bf16 mismatch vs reference"

    print("KERNEL_OK")
</pallas_src>

<mosaic_0001>
module attributes {stable_mosaic.version = 11 : i64} {
  func.func @_mha_kernel(%arg0: i32, %arg1: memref<1x8x32xf32, #tpu.memory_space<vmem>>, %arg2: memref<32x96xf32, #tpu.memory_space<vmem>>, %arg3: memref<1x96xf32, #tpu.memory_space<vmem>>, %arg4: memref<32x32xf32, #tpu.memory_space<vmem>>, %arg5: memref<1x32xf32, #tpu.memory_space<vmem>>, %arg6: memref<1x8x32xf32, #tpu.memory_space<vmem>>) attributes {dimension_semantics = [#tpu.dimension_semantics<parallel>], iteration_bounds = array<i64: 2>, scalar_prefetch = 0 : i64, scratch_operands = 0 : i64, tpu.core_type = #tpu.core_type<tc>, window_params = [{transform_indices = @transform_0, window_bounds = array<i64: 1, 8, 32>}, {pipeline_mode = #tpu.pipeline_mode<synchronous>, transform_indices = @transform_1, window_bounds = array<i64: 32, 96>}, {pipeline_mode = #tpu.pipeline_mode<synchronous>, transform_indices = @transform_2, window_bounds = array<i64: 1, 96>}, {pipeline_mode = #tpu.pipeline_mode<synchronous>, transform_indices = @transform_3, window_bounds = array<i64: 32, 32>}, {pipeline_mode = #tpu.pipeline_mode<synchronous>, transform_indices = @transform_4, window_bounds = array<i64: 1, 32>}, {transform_indices = @transform_5, window_bounds = array<i64: 1, 8, 32>}]} {
    %c0 = arith.constant 0 : index
    %c0_0 = arith.constant 0 : index
    %c0_1 = arith.constant 0 : index
    %0 = vector.load %arg1[%c0, %c0_0, %c0_1] : memref<1x8x32xf32, #tpu.memory_space<vmem>>, vector<1x8x32xf32>
    %1 = vector.shape_cast %0 : vector<1x8x32xf32> to vector<8x32xf32>
    %c0_2 = arith.constant 0 : index
    %c0_3 = arith.constant 0 : index
    %2 = vector.load %arg2[%c0_2, %c0_3] : memref<32x96xf32, #tpu.memory_space<vmem>>, vector<32x96xf32>
    %cst = arith.constant dense<0.000000e+00> : vector<8x96xf32>
    %3 = tpu.matmul %1, %2, %cst {dimension_numbers = #tpu.dot_dimension_numbers<[1], [0], [0], [1], [0, 0, 1, 1], [], []>} : vector<8x32xf32>, vector<32x96xf32>, vector<8x96xf32> -> vector<8x96xf32>
    %c0_4 = arith.constant 0 : index
    %c0_5 = arith.constant 0 : index
    %4 = vector.load %arg3[%c0_4, %c0_5] : memref<1x96xf32, #tpu.memory_space<vmem>>, vector<1x96xf32>
    %5 = vector.broadcast %4 : vector<1x96xf32> to vector<8x96xf32>
    %6 = arith.addf %3, %5 : vector<8x96xf32>
    %7 = vector.extract_strided_slice %6 {offsets = [0, 0], sizes = [8, 8], strides = [1, 1]} : vector<8x96xf32> to vector<8x8xf32>
    %8 = vector.extract_strided_slice %6 {offsets = [0, 32], sizes = [8, 8], strides = [1, 1]} : vector<8x96xf32> to vector<8x8xf32>
    %9 = vector.extract_strided_slice %6 {offsets = [0, 64], sizes = [8, 8], strides = [1, 1]} : vector<8x96xf32> to vector<8x8xf32>
    %cst_6 = arith.constant dense<0.000000e+00> : vector<8x8xf32>
    %10 = tpu.matmul %7, %8, %cst_6 {dimension_numbers = #tpu.dot_dimension_numbers<[1], [1], [0], [0], [0, 0, 1, 0], [], []>} : vector<8x8xf32>, vector<8x8xf32>, vector<8x8xf32> -> vector<8x8xf32>
    %cst_7 = arith.constant 0.353553385 : f32
    %11 = vector.broadcast %cst_7 : f32 to vector<8x8xf32>
    %12 = arith.mulf %10, %11 : vector<8x8xf32>
    %cst_8 = arith.constant dense<0xFF800000> : vector<8xf32>
    %13 = vector.multi_reduction <maximumf>, %12, %cst_8 [1] : vector<8x8xf32> to vector<8xf32>
    %14 = vector.shape_cast %13 : vector<8xf32> to vector<8x1xf32>
    %15 = vector.broadcast %14 : vector<8x1xf32> to vector<8x8xf32>
    %16 = arith.subf %12, %15 : vector<8x8xf32>
    %17 = math.exp %16 : vector<8x8xf32>
    %cst_9 = arith.constant dense<0.000000e+00> : vector<8xf32>
    %18 = vector.multi_reduction <add>, %17, %cst_9 [1] : vector<8x8xf32> to vector<8xf32>
    %19 = vector.shape_cast %18 : vector<8xf32> to vector<8x1xf32>
    %20 = tpu.reciprocal %19 : vector<8x1xf32> -> vector<8x1xf32>
    %21 = vector.broadcast %20 : vector<8x1xf32> to vector<8x8xf32>
    %22 = arith.mulf %17, %21 : vector<8x8xf32>
    %cst_10 = arith.constant dense<0.000000e+00> : vector<8x8xf32>
    %23 = tpu.matmul %22, %9, %cst_10 {dimension_numbers = #tpu.dot_dimension_numbers<[1], [0], [0], [1], [0, 0, 1, 1], [], []>} : vector<8x8xf32>, vector<8x8xf32>, vector<8x8xf32> -> vector<8x8xf32>
    %24 = vector.extract_strided_slice %6 {offsets = [0, 8], sizes = [8, 8], strides = [1, 1]} : vector<8x96xf32> to vector<8x8xf32>
    %25 = vector.extract_strided_slice %6 {offsets = [0, 40], sizes = [8, 8], strides = [1, 1]} : vector<8x96xf32> to vector<8x8xf32>
    %26 = vector.extract_strided_slice %6 {offsets = [0, 72], sizes = [8, 8], strides = [1, 1]} : vector<8x96xf32> to vector<8x8xf32>
    %cst_11 = arith.constant dense<0.000000e+00> : vector<8x8xf32>
    %27 = tpu.matmul %24, %25, %cst_11 {dimension_numbers = #tpu.dot_dimension_numbers<[1], [1], [0], [0], [0, 0, 1, 0], [], []>} : vector<8x8xf32>, vector<8x8xf32>, vector<8x8xf32> -> vector<8x8xf32>
    %cst_12 = arith.constant 0.353553385 : f32
    %28 = vector.broadcast %cst_12 : f32 to vector<8x8xf32>
    %29 = arith.mulf %27, %28 : vector<8x8xf32>
    %cst_13 = arith.constant dense<0xFF800000> : vector<8xf32>
    %30 = vector.multi_reduction <maximumf>, %29, %cst_13 [1] : vector<8x8xf32> to vector<8xf32>
    %31 = vector.shape_cast %30 : vector<8xf32> to vector<8x1xf32>
    %32 = vector.broadcast %31 : vector<8x1xf32> to vector<8x8xf32>
    %33 = arith.subf %29, %32 : vector<8x8xf32>
    %34 = math.exp %33 : vector<8x8xf32>
    %cst_14 = arith.constant dense<0.000000e+00> : vector<8xf32>
    %35 = vector.multi_reduction <add>, %34, %cst_14 [1] : vector<8x8xf32> to vector<8xf32>
    %36 = vector.shape_cast %35 : vector<8xf32> to vector<8x1xf32>
    %37 = tpu.reciprocal %36 : vector<8x1xf32> -> vector<8x1xf32>
    %38 = vector.broadcast %37 : vector<8x1xf32> to vector<8x8xf32>
    %39 = arith.mulf %34, %38 : vector<8x8xf32>
    %cst_15 = arith.constant dense<0.000000e+00> : vector<8x8xf32>
    %40 = tpu.matmul %39, %26, %cst_15 {dimension_numbers = #tpu.dot_dimension_numbers<[1], [0], [0], [1], [0, 0, 1, 1], [], []>} : vector<8x8xf32>, vector<8x8xf32>, vector<8x8xf32> -> vector<8x8xf32>
    %41 = vector.extract_strided_slice %6 {offsets = [0, 16], sizes = [8, 8], strides = [1, 1]} : vector<8x96xf32> to vector<8x8xf32>
    %42 = vector.extract_strided_slice %6 {offsets = [0, 48], sizes = [8, 8], strides = [1, 1]} : vector<8x96xf32> to vector<8x8xf32>
    %43 = vector.extract_strided_slice %6 {offsets = [0, 80], sizes = [8, 8], strides = [1, 1]} : vector<8x96xf32> to vector<8x8xf32>
    %cst_16 = arith.constant dense<0.000000e+00> : vector<8x8xf32>
    %44 = tpu.matmul %41, %42, %cst_16 {dimension_numbers = #tpu.dot_dimension_numbers<[1], [1], [0], [0], [0, 0, 1, 0], [], []>} : vector<8x8xf32>, vector<8x8xf32>, vector<8x8xf32> -> vector<8x8xf32>
    %cst_17 = arith.constant 0.353553385 : f32
    %45 = vector.broadcast %cst_17 : f32 to vector<8x8xf32>
    %46 = arith.mulf %44, %45 : vector<8x8xf32>
    %cst_18 = arith.constant dense<0xFF800000> : vector<8xf32>
    %47 = vector.multi_reduction <maximumf>, %46, %cst_18 [1] : vector<8x8xf32> to vector<8xf32>
    %48 = vector.shape_cast %47 : vector<8xf32> to vector<8x1xf32>
    %49 = vector.broadcast %48 : vector<8x1xf32> to vector<8x8xf32>
    %50 = arith.subf %46, %49 : vector<8x8xf32>
    %51 = math.exp %50 : vector<8x8xf32>
    %cst_19 = arith.constant dense<0.000000e+00> : vector<8xf32>
    %52 = vector.multi_reduction <add>, %51, %cst_19 [1] : vector<8x8xf32> to vector<8xf32>
    %53 = vector.shape_cast %52 : vector<8xf32> to vector<8x1xf32>
    %54 = tpu.reciprocal %53 : vector<8x1xf32> -> vector<8x1xf32>
    %55 = vector.broadcast %54 : vector<8x1xf32> to vector<8x8xf32>
    %56 = arith.mulf %51, %55 : vector<8x8xf32>
    %cst_20 = arith.constant dense<0.000000e+00> : vector<8x8xf32>
    %57 = tpu.matmul %56, %43, %cst_20 {dimension_numbers = #tpu.dot_dimension_numbers<[1], [0], [0], [1], [0, 0, 1, 1], [], []>} : vector<8x8xf32>, vector<8x8xf32>, vector<8x8xf32> -> vector<8x8xf32>
    %58 = vector.extract_strided_slice %6 {offsets = [0, 24], sizes = [8, 8], strides = [1, 1]} : vector<8x96xf32> to vector<8x8xf32>
    %59 = vector.extract_strided_slice %6 {offsets = [0, 56], sizes = [8, 8], strides = [1, 1]} : vector<8x96xf32> to vector<8x8xf32>
    %60 = vector.extract_strided_slice %6 {offsets = [0, 88], sizes = [8, 8], strides = [1, 1]} : vector<8x96xf32> to vector<8x8xf32>
    %cst_21 = arith.constant dense<0.000000e+00> : vector<8x8xf32>
    %61 = tpu.matmul %58, %59, %cst_21 {dimension_numbers = #tpu.dot_dimension_numbers<[1], [1], [0], [0], [0, 0, 1, 0], [], []>} : vector<8x8xf32>, vector<8x8xf32>, vector<8x8xf32> -> vector<8x8xf32>
    %cst_22 = arith.constant 0.353553385 : f32
    %62 = vector.broadcast %cst_22 : f32 to vector<8x8xf32>
    %63 = arith.mulf %61, %62 : vector<8x8xf32>
    %cst_23 = arith.constant dense<0xFF800000> : vector<8xf32>
    %64 = vector.multi_reduction <maximumf>, %63, %cst_23 [1] : vector<8x8xf32> to vector<8xf32>
    %65 = vector.shape_cast %64 : vector<8xf32> to vector<8x1xf32>
    %66 = vector.broadcast %65 : vector<8x1xf32> to vector<8x8xf32>
    %67 = arith.subf %63, %66 : vector<8x8xf32>
    %68 = math.exp %67 : vector<8x8xf32>
    %cst_24 = arith.constant dense<0.000000e+00> : vector<8xf32>
    %69 = vector.multi_reduction <add>, %68, %cst_24 [1] : vector<8x8xf32> to vector<8xf32>
    %70 = vector.shape_cast %69 : vector<8xf32> to vector<8x1xf32>
    %71 = tpu.reciprocal %70 : vector<8x1xf32> -> vector<8x1xf32>
    %72 = vector.broadcast %71 : vector<8x1xf32> to vector<8x8xf32>
    %73 = arith.mulf %68, %72 : vector<8x8xf32>
    %cst_25 = arith.constant dense<0.000000e+00> : vector<8x8xf32>
    %74 = tpu.matmul %73, %60, %cst_25 {dimension_numbers = #tpu.dot_dimension_numbers<[1], [0], [0], [1], [0, 0, 1, 1], [], []>} : vector<8x8xf32>, vector<8x8xf32>, vector<8x8xf32> -> vector<8x8xf32>
    %75 = tpu.concatenate %23, %40, %57, %74 in 1 : vector<8x8xf32>, vector<8x8xf32>, vector<8x8xf32>, vector<8x8xf32> -> vector<8x32xf32>
    %c0_26 = arith.constant 0 : index
    %c0_27 = arith.constant 0 : index
    %76 = vector.load %arg4[%c0_26, %c0_27] : memref<32x32xf32, #tpu.memory_space<vmem>>, vector<32x32xf32>
    %cst_28 = arith.constant dense<0.000000e+00> : vector<8x32xf32>
    %77 = tpu.matmul %75, %76, %cst_28 {dimension_numbers = #tpu.dot_dimension_numbers<[1], [0], [0], [1], [0, 0, 1, 1], [], []>} : vector<8x32xf32>, vector<32x32xf32>, vector<8x32xf32> -> vector<8x32xf32>
    %c0_29 = arith.constant 0 : index
    %c0_30 = arith.constant 0 : index
    %78 = vector.load %arg5[%c0_29, %c0_30] : memref<1x32xf32, #tpu.memory_space<vmem>>, vector<1x32xf32>
    %79 = vector.broadcast %78 : vector<1x32xf32> to vector<8x32xf32>
    %80 = arith.addf %77, %79 : vector<8x32xf32>
    %c0_31 = arith.constant 0 : index
    %c0_32 = arith.constant 0 : index
    %c0_33 = arith.constant 0 : index
    %81 = vector.load %arg6[%c0_31, %c0_32, %c0_33] : memref<1x8x32xf32, #tpu.memory_space<vmem>>, vector<1x8x32xf32>
    %82 = vector.shape_cast %81 : vector<1x8x32xf32> to vector<8x32xf32>
    %83 = vector.shape_cast %80 : vector<8x32xf32> to vector<1x8x32xf32>
    tpu.vector_store %arg6[%c0_31, %c0_32, %c0_33], %83 {strides = array<i32>} : memref<1x8x32xf32, #tpu.memory_space<vmem>>, vector<1x8x32xf32>,
    return
  }
  func.func @transform_0(%arg0: i32) -> (i32, i32, i32) {
    %c0_i32 = arith.constant 0 : i32
    %c0_i32_0 = arith.constant 0 : i32
    %c0_i32_1 = arith.constant 0 : i32
    return %arg0, %c0_i32, %c0_i32_0 : i32, i32, i32
  }
  func.func @transform_1(%arg0: i32) -> (i32, i32) {
    %c0_i32 = arith.constant 0 : i32
    %c0_i32_0 = arith.constant 0 : i32
    %c0_i32_1 = arith.constant 0 : i32
    return %c0_i32, %c0_i32_0 : i32, i32
  }
  func.func @transform_2(%arg0: i32) -> (i32, i32) {
    %c0_i32 = arith.constant 0 : i32
    %c0_i32_0 = arith.constant 0 : i32
    %c0_i32_1 = arith.constant 0 : i32
    return %c0_i32, %c0_i32_0 : i32, i32
  }
  func.func @transform_3(%arg0: i32) -> (i32, i32) {
    %c0_i32 = arith.constant 0 : i32
    %c0_i32_0 = arith.constant 0 : i32
    %c0_i32_1 = arith.constant 0 : i32
    return %c0_i32, %c0_i32_0 : i32, i32
  }
  func.func @transform_4(%arg0: i32) -> (i32, i32) {
    %c0_i32 = arith.constant 0 : i32
    %c0_i32_0 = arith.constant 0 : i32
    %c0_i32_1 = arith.constant 0 : i32
    return %c0_i32, %c0_i32_0 : i32, i32
  }
  func.func @transform_5(%arg0: i32) -> (i32, i32, i32) {
    %c0_i32 = arith.constant 0 : i32
    %c0_i32_0 = arith.constant 0 : i32
    %c0_i32_1 = arith.constant 0 : i32
    return %arg0, %c0_i32, %c0_i32_0 : i32, i32, i32
  }
}

</mosaic_0001>

<llo_original>
// kernel: tpu_custom_call.1
$region0: #{tpu_custom_call.1}
  #allocation0 [shape = 'u32[]', space=smem, size = 0x4, offset = 0x4, fixed_abs, tag = 'smem constant byte address 0x4 - core index']
  #allocation1 [shape = 'u32[144,128]{1,0:T(1,128)}', space=vmem, size = 0x12000, scoped, tag = 'internal scratch']
  %s0 = inlined_call_operand.hbm [shape: f32[2,8,32], index: 0, kind: input, shape index: {}]
  %s1 = inlined_call_operand.hbm [shape: f32[32,96], index: 1, kind: input, shape index: {}]
  %s2 = inlined_call_operand.vmem [shape: f32[1,96], index: 2, kind: input, shape index: {}]
  %s3 = inlined_call_operand.hbm [shape: f32[32,32], index: 3, kind: input, shape index: {}]
  %s4 = inlined_call_operand.vmem [shape: f32[1,32], index: 4, kind: input, shape index: {}]
  %s5 = inlined_call_operand.hbm [shape: f32[2,8,32], index: 5, kind: output, shape index: {}]
  %s6 = sld [smem:[#allocation0]]
  $region65: #{tpu_custom_call.1} parent=0
    _
  %s8 = ssub.s32 1, %s6
  %s9 = scalar_select 0, %s8, %s6
  $region1: #{tpu_custom_call.1} parent=0
    #allocation2 [shape = 'u8[8192]{0}', space=vmem, size = 0x2000, scoped, tag = 'input window, operand 0']
    #allocation3 [shape = 's32[2]{0}', space=sflag, size = 0x8, scoped, tag = 'scoped memory for tpu_custom_call.1']
    #allocation4 [shape = 's32[2]{0}', space=sflag, size = 0x8, scoped, tag = 'scoped memory for tpu_custom_call.1']
    #allocation5 [shape = 'u8[16384]{0}', space=vmem, size = 0x4000, scoped, tag = 'input window, operand 1, single buffered']
    #allocation6 [shape = 's32[1]{0}', space=sflag, size = 0x4, scoped, tag = 'scoped memory for tpu_custom_call.1']
    #allocation7 [shape = 'u8[16384]{0}', space=vmem, size = 0x4000, scoped, tag = 'input window, operand 3, single buffered']
    #allocation8 [shape = 'u8[8192]{0}', space=vmem, size = 0x2000, scoped, tag = 'output window, operand 0']
    %10 = vsyncpa [#allocation3], 0
    %s11 = scalar_lea.sflag [#allocation3], 1
    %12 = vsyncpa %s11, 0
    %13 = vsyncpa [#allocation6], 0
    %14 = vsyncpa [#allocation4], 0
    %s15 = scalar_lea.sflag [#allocation4], 1
    %16 = vsyncpa %s15, 0
    loop: start=0, step=1, limit=4
    $region2: #{tpu_custom_call.1} parent=1 // loop_pre_header
      _
    $region3: #{tpu_custom_call.1} parent=1 // loop_header
      %s18 = sphi 0, %s22
      %p19 = scmp.ge.s32.totalorder %s18, 4
      %s28 = sphi 0, %s30
      %s31 = sphi 0, %s28
      %s32 = sphi 0, %s31
      %s48 = sphi 0, %s32
      %s52 = sphi 0, %s52
      %s54 = sphi 0, %s52
      %s55 = sphi 0, %s54
      %s69 = sphi 0, %s55
      %s73 = sphi 0, %s73
      %s75 = sphi 0, %s73
      %s76 = sphi 0, %s75
      %s90 = sphi 0, %s76
      %s94 = sphi 0, %s94
      %s96 = sphi 0, %s94
      %s97 = sphi 0, %s96
      %s111 = sphi 0, %s97
      %s115 = sphi 0, %s115
      %s117 = sphi 0, %s115
      %s118 = sphi 0, %s117
      %s132 = sphi 0, %s118
      %s138 = sphi 0, %s140
      %s141 = sphi 0, %s138
      %s142 = sphi 0, %s141
      %s158 = sphi 0, %s142
    $region4: #{tpu_custom_call.1} parent=1 // loop_header_branch
      %21 = sbr.rel (%p19) target = $region8
    $region5: #{tpu_custom_call.1} parent=1 // loop_body
      %s23 = ssub.s32 %s18, 1
      %s24 = ssub.s32 %s18, 2
      %s25 = sadd.s32 %s18, 1
      %s26 = ssub.s32 %s18, %s25
      %p27 = scmp.eq.s32.totalorder %s26, 0
      %s29 = sadd.s32 %s28, 1
      %s30 = scalar_select %p27, %s28, %s29
      %p33 = pneg %p27
      %p34 = scmp.eq.s32.totalorder %s18, 1
      %p35 = por %p33, %p34
      %p36 = scmp.ne.s32.totalorder %s28, %s31
      %p37 = scmp.eq.s32.totalorder %s18, 0
      %p38 = por %p36, %p37
      %p39 = scmp.ne.s32.totalorder %s28, %s31
      %p40 = scmp.eq.s32.totalorder %s23, 1
      %p41 = por %p39, %p40
      %p42 = scmp.ne.s32.totalorder %s31, %s32
      %p43 = scmp.eq.s32.totalorder %s23, 0
      %p44 = por %p42, %p43
      %p45 = scmp.ne.s32.totalorder %s31, %s32
      %p46 = scmp.eq.s32.totalorder %s24, 1
      %p47 = por %p45, %p46
      %p49 = scmp.ne.s32.totalorder %s32, %s48
      %p50 = scmp.eq.s32.totalorder %s24, 0
      %p51 = por %p49, %p50
      %s53 = sadd.s32 %s52, 1
      %p56 = scmp.eq.s32.totalorder %s18, 1
      %p57 = scmp.ne.s32.totalorder %s52, %s54
      %p58 = scmp.eq.s32.totalorder %s18, 0
      %p59 = por %p57, %p58
      %p60 = scmp.ne.s32.totalorder %s52, %s54
      %p61 = scmp.eq.s32.totalorder %s23, 1
      %p62 = por %p60, %p61
      %p63 = scmp.ne.s32.totalorder %s54, %s55
      %p64 = scmp.eq.s32.totalorder %s23, 0
      %p65 = por %p63, %p64
      %p66 = scmp.ne.s32.totalorder %s54, %s55
      %p67 = scmp.eq.s32.totalorder %s24, 1
      %p68 = por %p66, %p67
      %p70 = scmp.ne.s32.totalorder %s55, %s69
      %p71 = scmp.eq.s32.totalorder %s24, 0
      %p72 = por %p70, %p71
      %s74 = sadd.s32 %s73, 1
      %p77 = scmp.eq.s32.totalorder %s18, 1
      %p78 = scmp.ne.s32.totalorder %s73, %s75
      %p79 = scmp.eq.s32.totalorder %s18, 0
      %p80 = por %p78, %p79
      %p81 = scmp.ne.s32.totalorder %s73, %s75
      %p82 = scmp.eq.s32.totalorder %s23, 1
      %p83 = por %p81, %p82
      %p84 = scmp.ne.s32.totalorder %s75, %s76
      %p85 = scmp.eq.s32.totalorder %s23, 0
      %p86 = por %p84, %p85
      %p87 = scmp.ne.s32.totalorder %s75, %s76
      %p88 = scmp.eq.s32.totalorder %s24, 1
      %p89 = por %p87, %p88
      %p91 = scmp.ne.s32.totalorder %s76, %s90
      %p92 = scmp.eq.s32.totalorder %s24, 0
      %p93 = por %p91, %p92
      %s95 = sadd.s32 %s94, 1
      %p98 = scmp.eq.s32.totalorder %s18, 1
      %p99 = scmp.ne.s32.totalorder %s94, %s96
      %p100 = scmp.eq.s32.totalorder %s18, 0
      %p101 = por %p99, %p100
      %p102 = scmp.ne.s32.totalorder %s94, %s96
      %p103 = scmp.eq.s32.totalorder %s23, 1
      %p104 = por %p102, %p103
      %p105 = scmp.ne.s32.totalorder %s96, %s97
      %p106 = scmp.eq.s32.totalorder %s23, 0
      %p107 = por %p105, %p106
      %p108 = scmp.ne.s32.totalorder %s96, %s97
      %p109 = scmp.eq.s32.totalorder %s24, 1
      %p110 = por %p108, %p109
      %p112 = scmp.ne.s32.totalorder %s97, %s111
      %p113 = scmp.eq.s32.totalorder %s24, 0
      %p114 = por %p112, %p113
      %s116 = sadd.s32 %s115, 1
      %p119 = scmp.eq.s32.totalorder %s18, 1
      %p120 = scmp.ne.s32.totalorder %s115, %s117
      %p121 = scmp.eq.s32.totalorder %s18, 0
      %p122 = por %p120, %p121
      %p123 = scmp.ne.s32.totalorder %s115, %s117
      %p124 = scmp.eq.s32.totalorder %s23, 1
      %p125 = por %p123, %p124
      %p126 = scmp.ne.s32.totalorder %s117, %s118
      %p127 = scmp.eq.s32.totalorder %s23, 0
      %p128 = por %p126, %p127
      %p129 = scmp.ne.s32.totalorder %s117, %s118
      %p130 = scmp.eq.s32.totalorder %s24, 1
      %p131 = por %p129, %p130
      %p133 = scmp.ne.s32.totalorder %s118, %s132
      %p134 = scmp.eq.s32.totalorder %s24, 0
      %p135 = por %p133, %p134
      %s136 = ssub.s32 %s18, %s25
      %p137 = scmp.eq.s32.totalorder %s136, 0
      %s139 = sadd.s32 %s138, 1
      %s140 = scalar_select %p137, %s138, %s139
      %p143 = pneg %p137
      %p144 = scmp.eq.s32.totalorder %s18, 1
      %p145 = por %p143, %p144
      %p146 = scmp.ne.s32.totalorder %s138, %s141
      %p147 = scmp.eq.s32.totalorder %s18, 0
      %p148 = por %p146, %p147
      %p149 = scmp.ne.s32.totalorder %s138, %s141
      %p150 = scmp.eq.s32.totalorder %s23, 1
      %p151 = por %p149, %p150
      %p152 = scmp.ne.s32.totalorder %s141, %s142
      %p153 = scmp.eq.s32.totalorder %s23, 0
      %p154 = por %p152, %p153
      %p155 = scmp.ne.s32.totalorder %s141, %s142
      %p156 = scmp.eq.s32.totalorder %s24, 1
      %p157 = por %p155, %p156
      %p159 = scmp.ne.s32.totalorder %s142, %s158
      %p160 = scmp.eq.s32.totalorder %s24, 0
      %p161 = por %p159, %p160
      %p162 = scmp.le.s32.totalorder 1, %s18
      %p163 = scmp.lt.s32.totalorder %s18, 3
      %p164 = pnand %p162, %p163
      %p165 = pneg %p164
      // Predicated region
      $region9: #{tpu_custom_call.1} parent=5 // pred_check
        _
      $region10: #{tpu_custom_call.1} parent=5 // pred_check_branch
        %167 = sbr.rel (%p164) target = $region12
      $region11: #{tpu_custom_call.1} parent=5 // pred_region
        %s168 = ssub.s32 %s18, 1
        // Predicated region
        $region13: #{tpu_custom_call.1} parent=11 // pred_check
          %p169 = pneg %p65
        $region14: #{tpu_custom_call.1} parent=11 // pred_check_branch
          %171 = sbr.rel (%p169) target = $region16
        $region15: #{tpu_custom_call.1} parent=11 // pred_region
          %s173 = ssub.s32 512, 512
          %174 = vsyncadd [#allocation6], %s173
          %s175 = sshll.u32 [#allocation5], 4
          %s176 = int_to_ptr.vmem [resolvable:$true] %s175
          %181 = dma.hbm_to_vmem [thread:$0]  %s1, 512, %s176, [#allocation6], 128, 128, 8
        $region16: #{tpu_custom_call.1} parent=11 // pred_fallthru
          _
        // Predicated region
        $region17: #{tpu_custom_call.1} parent=11 // pred_check
          %p182 = pneg %p86
        $region18: #{tpu_custom_call.1} parent=11 // pred_check_branch
          %184 = sbr.rel (%p182) target = $region20
        $region19: #{tpu_custom_call.1} parent=11 // pred_region
          _
        $region20: #{tpu_custom_call.1} parent=11 // pred_fallthru
          _
        // Predicated region
        $region21: #{tpu_custom_call.1} parent=11 // pred_check
          %p185 = pneg %p107
        $region22: #{tpu_custom_call.1} parent=11 // pred_check_branch
          %187 = sbr.rel (%p185) target = $region24
        $region23: #{tpu_custom_call.1} parent=11 // pred_region
          %s189 = ssub.s32 512, 512
          %190 = vsyncadd [#allocation6], %s189
          %s191 = sshll.u32 [#allocation7], 4
          %s192 = int_to_ptr.vmem [resolvable:$true] %s191
          %197 = dma.hbm_to_vmem [thread:$0]  %s3, 512, %s192, [#allocation6], 128, 128, 8
        $region24: #{tpu_custom_call.1} parent=11 // pred_fallthru
          _
        // Predicated region
        $region25: #{tpu_custom_call.1} parent=11 // pred_check
          %p198 = pneg %p128
        $region26: #{tpu_custom_call.1} parent=11 // pred_check_branch
          %200 = sbr.rel (%p198) target = $region28
        $region27: #{tpu_custom_call.1} parent=11 // pred_region
          _
        $region28: #{tpu_custom_call.1} parent=11 // pred_fallthru
          _
      $region12: #{tpu_custom_call.1} parent=5 // pred_fallthru
        _
      %p201 = scmp.lt.s32.totalorder %s18, 2
      // Predicated region
      $region29: #{tpu_custom_call.1} parent=5 // pred_check
        %p202 = pneg %p201
      $region30: #{tpu_custom_call.1} parent=5 // pred_check_branch
        %204 = sbr.rel (%p202) target = $region32
      $region31: #{tpu_custom_call.1} parent=5 // pred_region
        // Predicated region
        $region33: #{tpu_custom_call.1} parent=31 // pred_check
          %p205 = pneg %p38
        $region34: #{tpu_custom_call.1} parent=31 // pred_check_branch
          %207 = sbr.rel (%p205) target = $region36
        $region35: #{tpu_custom_call.1} parent=31 // pred_region
          %s208 = sand.u32 %s28, 1
          %s209 = scalar_lea.sflag [#allocation3], %s208
          %s210 = sand.u32 %s28, 1
          %s211 = smul.addr %s210, 8
          %s212 = scalar_lea.vmem [#allocation2], %s211
          %s214 = ssub.s32 128, 128
          %215 = vsyncadd %s209, %s214
          %s216 = smul.addr %s18, 128
          %s217 = scalar_lea.hbm %s0, %s216
          %s219 = sshll.u32 %s212, 4
          %s220 = int_to_ptr.vmem [resolvable:$true] %s219
          %222 = dma.hbm_to_vmem [thread:$0]  %s217, 128, %s220, %s209
        $region36: #{tpu_custom_call.1} parent=31 // pred_fallthru
          _
      $region32: #{tpu_custom_call.1} parent=5 // pred_fallthru
        _
      %p223 = scmp.le.s32.totalorder 1, %s18
      %p224 = scmp.lt.s32.totalorder %s18, 3
      %p225 = pnand %p223, %p224
      %p226 = pneg %p225
      // Predicated region
      $region37: #{tpu_custom_call.1} parent=5 // pred_check
        _
      $region38: #{tpu_custom_call.1} parent=5 // pred_check_branch
        %228 = sbr.rel (%p225) target = $region40
      $region39: #{tpu_custom_call.1} parent=5 // pred_region
        %s229 = ssub.s32 %s18, 1
        %s230 = sand.u32 %s31, 1
        %s231 = scalar_lea.sflag [#allocation3], %s230
        %s232 = sand.u32 %s31, 1
        %s233 = smul.addr %s232, 8
        %s234 = scalar_lea.vmem [#allocation2], %s233
        // Predicated region
        $region41: #{tpu_custom_call.1} parent=39 // pred_check
          %p235 = pneg %p44
        $region42: #{tpu_custom_call.1} parent=39 // pred_check_branch
          %237 = sbr.rel (%p235) target = $region44
        $region43: #{tpu_custom_call.1} parent=39 // pred_region
          %238 = dma.done %s231, 128
        $region44: #{tpu_custom_call.1} parent=39 // pred_fallthru
          _
        // Predicated region
        $region45: #{tpu_custom_call.1} parent=39 // pred_check
          %p239 = pneg %p65
        $region46: #{tpu_custom_call.1} parent=39 // pred_check_branch
          %241 = sbr.rel (%p239) target = $region48
        $region47: #{tpu_custom_call.1} parent=39 // pred_region
          %242 = dma.done [#allocation6], 512
        $region48: #{tpu_custom_call.1} parent=39 // pred_fallthru
          _
        // Predicated region
        $region49: #{tpu_custom_call.1} parent=39 // pred_check
          %p243 = pneg %p107
        $region50: #{tpu_custom_call.1} parent=39 // pred_check_branch
          %245 = sbr.rel (%p243) target = $region52
        $region51: #{tpu_custom_call.1} parent=39 // pred_region
          %246 = dma.done [#allocation6], 512
        $region52: #{tpu_custom_call.1} parent=39 // pred_fallthru
          _
        %s247 = sand.u32 %s31, 1
        %s248 = scalar_lea.sflag [#allocation3], %s247
        %s249 = sand.u32 %s31, 1
        %s250 = smul.addr %s249, 8
        %s251 = scalar_lea.vmem [#allocation2], %s250
        %p252 = pneg %p44
        %p253 = pneg %p41
        %p254 = pneg %p65
        %p255 = pneg %p62
        %p256 = pneg %p86
        %p257 = pneg %p83
        %p258 = pneg %p107
        %p259 = pneg %p104
        %p260 = pneg %p128
        %p261 = pneg %p125
        %p262 = pneg %p154
        %p263 = pneg %p151
        %s264 = sand.u32 %s141, 1
        %s265 = scalar_lea.sflag [#allocation4], %s264
        %s266 = sand.u32 %s141, 1
        %s267 = smul.addr %s266, 8
        %s268 = scalar_lea.vmem [#allocation8], %s267
        %v269 = vld [vmem:[%s234] sm:$0xff]
        %v270 = vld [vmem:[#allocation5] sm:$0xff]
        %v271 = vld [vmem:[#allocation5 + $0x8] sm:$0xff]
        %v272 = vld [vmem:[#allocation5 + $0x10] sm:$0xff]
        %v273 = vld [vmem:[#allocation5 + $0x18] sm:$0xff]
        %v274 = vld [vmem:[%s2] sm:$0x1]
        %v276 = vlaneseq
        %v277 = vshrl.u32 %v276, 7
        %v278 = vsub.s32 0, %v277
        %v279 = vrot.slane %v274, %v278
        %vm281 = vcmask 261120
        %v283 = vsel %vm281, %v269, 0
        %285 = vmatprep.subr.mxu0 0.0
        %286 = vmatpush1.msra.mxu0 %v270
        %287 = vmatprep.subr.mxu0 0.0
        %288 = vmatpush1.msra.mxu0 %v271
        %289 = vmatprep.subr.mxu0 0.0
        %290 = vmatpush1.msra.mxu0 %v272
        %291 = vmatprep.subr.mxu0 0.0
        %292 = vmatpush1.msra.mxu0 %v273
        %293 = vmatprep.subr.mxu0 0.0
        %294 = vmatpush1.msra.mxu0 0.0
        %295 = vmatprep.subr.mxu0 0.0
        %296 = vmatpush1.msra.mxu0 0.0
        %297 = vmatprep.subr.mxu0 0.0
        %298 = vmatpush1.msra.mxu0 0.0
        %299 = vmatprep.subr.mxu0 0.0
        %300 = vmatpush1.msra.mxu0 0.0
        %301 = vmatprep.subr.mxu0 0.0
        %302 = vmatpush1.msra.mxu0 0.0
        %303 = vmatprep.subr.mxu0 0.0
        %304 = vmatpush1.msra.mxu0 0.0
        %305 = vmatprep.subr.mxu0 0.0
        %306 = vmatpush1.msra.mxu0 0.0
        %307 = vmatprep.subr.mxu0 0.0
        %308 = vmatpush1.msra.mxu0 0.0
        %309 = vmatprep.subr.mxu0 0.0
        %310 = vmatpush1.msra.mxu0 0.0
        %311 = vmatprep.subr.mxu0 0.0
        %312 = vmatpush1.msra.mxu0 0.0
        %313 = vmatprep.subr.mxu0 0.0
        %314 = vmatpush1.msra.mxu0 0.0
        %315 = vmatprep.subr.mxu0 0.0
        %316 = vmatpush1.msra.mxu0 0.0
        %317 = vmatprep.subr.mxu0 0.0
        %318 = vmatpush1.msra.mxu0 0.0
        %319 = vmatprep.subr.mxu0 0.0
        %320 = vmatpush1.msra.mxu0 0.0
        %321 = vmatprep.subr.mxu0 0.0
        %322 = vmatpush1.msra.mxu0 0.0
        %323 = vmatprep.subr.mxu0 0.0
        %324 = vmatpush1.msra.mxu0 0.0
        %325 = vmatprep.subr.mxu0 0.0
        %326 = vmatpush1.msra.mxu0 0.0
        %327 = vmatprep.subr.mxu0 0.0
        %328 = vmatpush1.msra.mxu0 0.0
        %329 = vmatprep.subr.mxu0 0.0
        %330 = vmatpush1.msra.mxu0 0.0
        %331 = vmatprep.subr.mxu0 0.0
        %332 = vmatpush1.msra.mxu0 0.0
        %333 = vmatprep.subr.mxu0 0.0
        %334 = vmatpush1.msra.mxu0 0.0
        %335 = vmatprep.subr.mxu0 0.0
        %336 = vmatpush1.msra.mxu0 0.0
        %337 = vmatprep.subr.mxu0 0.0
        %338 = vmatpush1.msra.mxu0 0.0
        %339 = vmatprep.subr.mxu0 0.0
        %340 = vmatpush1.msra.mxu0 0.0
        %341 = vmatprep.subr.mxu0 0.0
        %342 = vmatpush1.msra.mxu0 0.0
        %343 = vmatprep.subr.mxu0 0.0
        %344 = vmatpush1.msra.mxu0 0.0
        %345 = vmatprep.subr.mxu0 0.0
        %346 = vmatpush1.msra.mxu0 0.0
        %347 = vmatprep.subr.mxu0 0.0
        %348 = vmatpush1.msra.mxu0 0.0
        %349 = vmatprep.mubr.f32.mxu0 0.0
        %350 = vmatmul.mubr.f32.gmra.mrb[0].mxu0 %v283
        %v351 = vpop.f32.mrb[0].mxu0
        %v352 = vadd.f32 %v279, %v351
        %v353 = vpop.f32.mrb[0].mxu0
        %354 = vdwg.mxu0
        %356 = vrot.lane.b32.xlu0 %v352, 96
        %v357 = vpop.permute.xlu0 %356
        %vm358 = vcmask 64512
        %v359 = vsel %vm358, %v352, 0
        %v361 = vsel %vm358, %v357, 0
        %363 = vmatprep.subr.mxu0 0.0
        %364 = vmatpush1.xpose.msra.mxu0 %v361
        %365 = vmatprep.subr.mxu0 0.0
        %366 = vmatpush1.xpose.msra.mxu0 0.0
        %367 = vmatprep.subr.mxu0 0.0
        %368 = vmatpush1.xpose.msra.mxu0 0.0
        %369 = vmatprep.subr.mxu0 0.0
        %370 = vmatpush1.xpose.msra.mxu0 0.0
        %371 = vmatprep.subr.mxu0 0.0
        %372 = vmatpush1.xpose.msra.mxu0 0.0
        %373 = vmatprep.subr.mxu0 0.0
        %374 = vmatpush1.xpose.msra.mxu0 0.0
        %375 = vmatprep.subr.mxu0 0.0
        %376 = vmatpush1.xpose.msra.mxu0 0.0
        %377 = vmatprep.subr.mxu0 0.0
        %378 = vmatpush1.xpose.msra.mxu0 0.0
        %379 = vmatprep.subr.mxu0 0.0
        %380 = vmatpush1.xpose.msra.mxu0 0.0
        %381 = vmatprep.subr.mxu0 0.0
        %382 = vmatpush1.xpose.msra.mxu0 0.0
        %383 = vmatprep.subr.mxu0 0.0
        %384 = vmatpush1.xpose.msra.mxu0 0.0
        %385 = vmatprep.subr.mxu0 0.0
        %386 = vmatpush1.xpose.msra.mxu0 0.0
        %387 = vmatprep.subr.mxu0 0.0
        %388 = vmatpush1.xpose.msra.mxu0 0.0
        %389 = vmatprep.subr.mxu0 0.0
        %390 = vmatpush1.xpose.msra.mxu0 0.0
        %391 = vmatprep.subr.mxu0 0.0
        %392 = vmatpush1.xpose.msra.mxu0 0.0
        %393 = vmatprep.subr.mxu0 0.0
        %394 = vmatpush1.xpose.msra.mxu0 0.0
        %395 = vmatprep.subr.mxu0 0.0
        %396 = vmatpush1.xpose.msra.mxu0 0.0
        %397 = vmatprep.subr.mxu0 0.0
        %398 = vmatpush1.xpose.msra.mxu0 0.0
        %399 = vmatprep.subr.mxu0 0.0
        %400 = vmatpush1.xpose.msra.mxu0 0.0
        %401 = vmatprep.subr.mxu0 0.0
        %402 = vmatpush1.xpose.msra.mxu0 0.0
        %403 = vmatprep.subr.mxu0 0.0
        %404 = vmatpush1.xpose.msra.mxu0 0.0
        %405 = vmatprep.subr.mxu0 0.0
        %406 = vmatpush1.xpose.msra.mxu0 0.0
        %407 = vmatprep.subr.mxu0 0.0
        %408 = vmatpush1.xpose.msra.mxu0 0.0
        %409 = vmatprep.subr.mxu0 0.0
        %410 = vmatpush1.xpose.msra.mxu0 0.0
        %411 = vmatprep.subr.mxu0 0.0
        %412 = vmatpush1.xpose.msra.mxu0 0.0
        %413 = vmatprep.subr.mxu0 0.0
        %414 = vmatpush1.xpose.msra.mxu0 0.0
        %415 = vmatprep.subr.mxu0 0.0
        %416 = vmatpush1.xpose.msra.mxu0 0.0
        %417 = vmatprep.subr.mxu0 0.0
        %418 = vmatpush1.xpose.msra.mxu0 0.0
        %419 = vmatprep.subr.mxu0 0.0
        %420 = vmatpush1.xpose.msra.mxu0 0.0
        %421 = vmatprep.subr.mxu0 0.0
        %422 = vmatpush1.xpose.msra.mxu0 0.0
        %423 = vmatprep.subr.mxu0 0.0
        %424 = vmatpush1.xpose.msra.mxu0 0.0
        %425 = vmatprep.subr.mxu0 0.0
        %426 = vmatpush1.xpose.msra.mxu0 0.0
        %427 = vmatprep.mubr.f32.mxu0 0.0
        %428 = vmatmul.mubr.f32.gmra.mrb[0].mxu0 %v359
        %v429 = vpop.f32.mrb[0].mxu0
        %v430 = vadd.f32 0.0, %v429
        %v431 = vpop.f32.mrb[0].mxu0
        %432 = vdwg.mxu0
        %v433 = vmul.f32 %v430, 0.35355338
        %v434 = vsel %vm358, %v433, -inf
        %435 = vmax.xlane.f32.xlu0 %v434
        %v436 = vpop.xlane.xlu0 %435
        %v437 = vsub.f32 %v433, %v436
        %v438 = vmul.f32 %v437, 1.442695
        %v439 = vpow.pop %v438
        %v440 = vsel %vm358, %v439, 0.0
        %441 = vadd.xlane.f32.xlu0 %v440
        %v442 = vpop.xlane.xlu0 %441
        %v443 = vrcp.pop %v442
        %v444 = vmul.f32 %v439, %v443
        %445 = vrot.lane.b32.xlu0 %v352, 64
        %v446 = vpop.permute.xlu0 %445
        %v449 = vsel %vm358, %v444, 0
        %451 = vmatprep.subr.mxu0 0.0
        %452 = vmatpush1.msra.mxu0 %v446
        %453 = vmatprep.subr.mxu0 0.0
        %454 = vmatpush1.msra.mxu0 0.0
        %455 = vmatprep.subr.mxu0 0.0
        %456 = vmatpush1.msra.mxu0 0.0
        %457 = vmatprep.subr.mxu0 0.0
        %458 = vmatpush1.msra.mxu0 0.0
        %459 = vmatprep.subr.mxu0 0.0
        %460 = vmatpush1.msra.mxu0 0.0
        %461 = vmatprep.subr.mxu0 0.0
        %462 = vmatpush1.msra.mxu0 0.0
        %463 = vmatprep.subr.mxu0 0.0
        %464 = vmatpush1.msra.mxu0 0.0
        %465 = vmatprep.subr.mxu0 0.0
        %466 = vmatpush1.msra.mxu0 0.0
        %467 = vmatprep.subr.mxu0 0.0
        %468 = vmatpush1.msra.mxu0 0.0
        %469 = vmatprep.subr.mxu0 0.0
        %470 = vmatpush1.msra.mxu0 0.0
        %471 = vmatprep.subr.mxu0 0.0
        %472 = vmatpush1.msra.mxu0 0.0
        %473 = vmatprep.subr.mxu0 0.0
        %474 = vmatpush1.msra.mxu0 0.0
        %475 = vmatprep.subr.mxu0 0.0
        %476 = vmatpush1.msra.mxu0 0.0
        %477 = vmatprep.subr.mxu0 0.0
        %478 = vmatpush1.msra.mxu0 0.0
        %479 = vmatprep.subr.mxu0 0.0
        %480 = vmatpush1.msra.mxu0 0.0
        %481 = vmatprep.subr.mxu0 0.0
        %482 = vmatpush1.msra.mxu0 0.0
        %483 = vmatprep.subr.mxu0 0.0
        %484 = vmatpush1.msra.mxu0 0.0
        %485 = vmatprep.subr.mxu0 0.0
        %486 = vmatpush1.msra.mxu0 0.0
        %487 = vmatprep.subr.mxu0 0.0
        %488 = vmatpush1.msra.mxu0 0.0
        %489 = vmatprep.subr.mxu0 0.0
        %490 = vmatpush1.msra.mxu0 0.0
        %491 = vmatprep.subr.mxu0 0.0
        %492 = vmatpush1.msra.mxu0 0.0
        %493 = vmatprep.subr.mxu0 0.0
        %494 = vmatpush1.msra.mxu0 0.0
        %495 = vmatprep.subr.mxu0 0.0
        %496 = vmatpush1.msra.mxu0 0.0
        %497 = vmatprep.subr.mxu0 0.0
        %498 = vmatpush1.msra.mxu0 0.0
        %499 = vmatprep.subr.mxu0 0.0
        %500 = vmatpush1.msra.mxu0 0.0
        %501 = vmatprep.subr.mxu0 0.0
        %502 = vmatpush1.msra.mxu0 0.0
        %503 = vmatprep.subr.mxu0 0.0
        %504 = vmatpush1.msra.mxu0 0.0
        %505 = vmatprep.subr.mxu0 0.0
        %506 = vmatpush1.msra.mxu0 0.0
        %507 = vmatprep.subr.mxu0 0.0
        %508 = vmatpush1.msra.mxu0 0.0
        %509 = vmatprep.subr.mxu0 0.0
        %510 = vmatpush1.msra.mxu0 0.0
        %511 = vmatprep.subr.mxu0 0.0
        %512 = vmatpush1.msra.mxu0 0.0
        %513 = vmatprep.subr.mxu0 0.0
        %514 = vmatpush1.msra.mxu0 0.0
        %515 = vmatprep.mubr.f32.mxu0 0.0
        %516 = vmatmul.mubr.f32.gmra.mrb[0].mxu0 %v449
        %v517 = vpop.f32.mrb[0].mxu0
        %v518 = vadd.f32 0.0, %v517
        %v519 = vpop.f32.mrb[0].mxu0
        %520 = vdwg.mxu0
        %521 = vrot.lane.b32.xlu0 %v352, 120
        %v522 = vpop.permute.xlu0 %521
        %523 = vrot.lane.b32.xlu0 %v352, 88
        %v524 = vpop.permute.xlu0 %523
        %v525 = vsel %vm358, %v522, 0
        %v527 = vsel %vm358, %v524, 0
        %529 = vmatprep.subr.mxu0 0.0
        %530 = vmatpush1.xpose.msra.mxu0 %v527
        %531 = vmatprep.subr.mxu0 0.0
        %532 = vmatpush1.xpose.msra.mxu0 0.0
        %533 = vmatprep.subr.mxu0 0.0
        %534 = vmatpush1.xpose.msra.mxu0 0.0
        %535 = vmatprep.subr.mxu0 0.0
        %536 = vmatpush1.xpose.msra.mxu0 0.0
        %537 = vmatprep.subr.mxu0 0.0
        %538 = vmatpush1.xpose.msra.mxu0 0.0
        %539 = vmatprep.subr.mxu0 0.0
        %540 = vmatpush1.xpose.msra.mxu0 0.0
        %541 = vmatprep.subr.mxu0 0.0
        %542 = vmatpush1.xpose.msra.mxu0 0.0
        %543 = vmatprep.subr.mxu0 0.0
        %544 = vmatpush1.xpose.msra.mxu0 0.0
        %545 = vmatprep.subr.mxu0 0.0
        %546 = vmatpush1.xpose.msra.mxu0 0.0
        %547 = vmatprep.subr.mxu0 0.0
        %548 = vmatpush1.xpose.msra.mxu0 0.0
        %549 = vmatprep.subr.mxu0 0.0
        %550 = vmatpush1.xpose.msra.mxu0 0.0
        %551 = vmatprep.subr.mxu0 0.0
        %552 = vmatpush1.xpose.msra.mxu0 0.0
        %553 = vmatprep.subr.mxu0 0.0
        %554 = vmatpush1.xpose.msra.mxu0 0.0
        %555 = vmatprep.subr.mxu0 0.0
        %556 = vmatpush1.xpose.msra.mxu0 0.0
        %557 = vmatprep.subr.mxu0 0.0
        %558 = vmatpush1.xpose.msra.mxu0 0.0
        %559 = vmatprep.subr.mxu0 0.0
        %560 = vmatpush1.xpose.msra.mxu0 0.0
        %561 = vmatprep.subr.mxu0 0.0
        %562 = vmatpush1.xpose.msra.mxu0 0.0
        %563 = vmatprep.subr.mxu0 0.0
        %564 = vmatpush1.xpose.msra.mxu0 0.0
        %565 = vmatprep.subr.mxu0 0.0
        %566 = vmatpush1.xpose.msra.mxu0 0.0
        %567 = vmatprep.subr.mxu0 0.0
        %568 = vmatpush1.xpose.msra.mxu0 0.0
        %569 = vmatprep.subr.mxu0 0.0
        %570 = vmatpush1.xpose.msra.mxu0 0.0
        %571 = vmatprep.subr.mxu0 0.0
        %572 = vmatpush1.xpose.msra.mxu0 0.0
        %573 = vmatprep.subr.mxu0 0.0
        %574 = vmatpush1.xpose.msra.mxu0 0.0
        %575 = vmatprep.subr.mxu0 0.0
        %576 = vmatpush1.xpose.msra.mxu0 0.0
        %577 = vmatprep.subr.mxu0 0.0
        %578 = vmatpush1.xpose.msra.mxu0 0.0
        %579 = vmatprep.subr.mxu0 0.0
        %580 = vmatpush1.xpose.msra.mxu0 0.0
        %581 = vmatprep.subr.mxu0 0.0
        %582 = vmatpush1.xpose.msra.mxu0 0.0
        %583 = vmatprep.subr.mxu0 0.0
        %584 = vmatpush1.xpose.msra.mxu0 0.0
        %585 = vmatprep.subr.mxu0 0.0
        %586 = vmatpush1.xpose.msra.mxu0 0.0
        %587 = vmatprep.subr.mxu0 0.0
        %588 = vmatpush1.xpose.msra.mxu0 0.0
        %589 = vmatprep.subr.mxu0 0.0
        %590 = vmatpush1.xpose.msra.mxu0 0.0
        %591 = vmatprep.subr.mxu0 0.0
        %592 = vmatpush1.xpose.msra.mxu0 0.0
        %593 = vmatprep.mubr.f32.mxu0 0.0
        %594 = vmatmul.mubr.f32.gmra.mrb[0].mxu0 %v525
        %v595 = vpop.f32.mrb[0].mxu0
        %v596 = vadd.f32 0.0, %v595
        %v597 = vpop.f32.mrb[0].mxu0
        %598 = vdwg.mxu0
        %v599 = vmul.f32 %v596, 0.35355338
        %v600 = vsel %vm358, %v599, -inf
        %601 = vmax.xlane.f32.xlu0 %v600
        %v602 = vpop.xlane.xlu0 %601
        %v603 = vsub.f32 %v599, %v602
        %v604 = vmul.f32 %v603, 1.442695
        %v605 = vpow.pop %v604
        %v606 = vsel %vm358, %v605, 0.0
        %607 = vadd.xlane.f32.xlu0 %v606
        %v608 = vpop.xlane.xlu0 %607
        %v609 = vrcp.pop %v608
        %v610 = vmul.f32 %v605, %v609
        %611 = vrot.lane.b32.xlu0 %v352, 56
        %v612 = vpop.permute.xlu0 %611
        %v615 = vsel %vm358, %v610, 0
        %617 = vmatprep.subr.mxu0 0.0
        %618 = vmatpush1.msra.mxu0 %v612
        %619 = vmatprep.subr.mxu0 0.0
        %620 = vmatpush1.msra.mxu0 0.0
        %621 = vmatprep.subr.mxu0 0.0
        %622 = vmatpush1.msra.mxu0 0.0
        %623 = vmatprep.subr.mxu0 0.0
        %624 = vmatpush1.msra.mxu0 0.0
        %625 = vmatprep.subr.mxu0 0.0
        %626 = vmatpush1.msra.mxu0 0.0
        %627 = vmatprep.subr.mxu0 0.0
        %628 = vmatpush1.msra.mxu0 0.0
        %629 = vmatprep.subr.mxu0 0.0
        %630 = vmatpush1.msra.mxu0 0.0
        %631 = vmatprep.subr.mxu0 0.0
        %632 = vmatpush1.msra.mxu0 0.0
        %633 = vmatprep.subr.mxu0 0.0
        %634 = vmatpush1.msra.mxu0 0.0
        %635 = vmatprep.subr.mxu0 0.0
        %636 = vmatpush1.msra.mxu0 0.0
        %637 = vmatprep.subr.mxu0 0.0
        %638 = vmatpush1.msra.mxu0 0.0
        %639 = vmatprep.subr.mxu0 0.0
        %640 = vmatpush1.msra.mxu0 0.0
        %641 = vmatprep.subr.mxu0 0.0
        %642 = vmatpush1.msra.mxu0 0.0
        %643 = vmatprep.subr.mxu0 0.0
        %644 = vmatpush1.msra.mxu0 0.0
        %645 = vmatprep.subr.mxu0 0.0
        %646 = vmatpush1.msra.mxu0 0.0
        %647 = vmatprep.subr.mxu0 0.0
        %648 = vmatpush1.msra.mxu0 0.0
        %649 = vmatprep.subr.mxu0 0.0
        %650 = vmatpush1.msra.mxu0 0.0
        %651 = vmatprep.subr.mxu0 0.0
        %652 = vmatpush1.msra.mxu0 0.0
        %653 = vmatprep.subr.mxu0 0.0
        %654 = vmatpush1.msra.mxu0 0.0
        %655 = vmatprep.subr.mxu0 0.0
        %656 = vmatpush1.msra.mxu0 0.0
        %657 = vmatprep.subr.mxu0 0.0
        %658 = vmatpush1.msra.mxu0 0.0
        %659 = vmatprep.subr.mxu0 0.0
        %660 = vmatpush1.msra.mxu0 0.0
        %661 = vmatprep.subr.mxu0 0.0
        %662 = vmatpush1.msra.mxu0 0.0
        %663 = vmatprep.subr.mxu0 0.0
        %664 = vmatpush1.msra.mxu0 0.0
        %665 = vmatprep.subr.mxu0 0.0
        %666 = vmatpush1.msra.mxu0 0.0
        %667 = vmatprep.subr.mxu0 0.0
        %668 = vmatpush1.msra.mxu0 0.0
        %669 = vmatprep.subr.mxu0 0.0
        %670 = vmatpush1.msra.mxu0 0.0
        %671 = vmatprep.subr.mxu0 0.0
        %672 = vmatpush1.msra.mxu0 0.0
        %673 = vmatprep.subr.mxu0 0.0
        %674 = vmatpush1.msra.mxu0 0.0
        %675 = vmatprep.subr.mxu0 0.0
        %676 = vmatpush1.msra.mxu0 0.0
        %677 = vmatprep.subr.mxu0 0.0
        %678 = vmatpush1.msra.mxu0 0.0
        %679 = vmatprep.subr.mxu0 0.0
        %680 = vmatpush1.msra.mxu0 0.0
        %681 = vmatprep.mubr.f32.mxu0 0.0
        %682 = vmatmul.mubr.f32.gmra.mrb[0].mxu0 %v615
        %v683 = vpop.f32.mrb[0].mxu0
        %v684 = vadd.f32 0.0, %v683
        %v685 = vpop.f32.mrb[0].mxu0
        %686 = vdwg.mxu0
        %687 = vrot.lane.b32.xlu0 %v352, 112
        %v688 = vpop.permute.xlu0 %687
        %689 = vrot.lane.b32.xlu0 %v352, 80
        %v690 = vpop.permute.xlu0 %689
        %v691 = vsel %vm358, %v688, 0
        %v693 = vsel %vm358, %v690, 0
        %695 = vmatprep.subr.mxu0 0.0
        %696 = vmatpush1.xpose.msra.mxu0 %v693
        %697 = vmatprep.subr.mxu0 0.0
        %698 = vmatpush1.xpose.msra.mxu0 0.0
        %699 = vmatprep.subr.mxu0 0.0
        %700 = vmatpush1.xpose.msra.mxu0 0.0
        %701 = vmatprep.subr.mxu0 0.0
        %702 = vmatpush1.xpose.msra.mxu0 0.0
        %703 = vmatprep.subr.mxu0 0.0
        %704 = vmatpush1.xpose.msra.mxu0 0.0
        %705 = vmatprep.subr.mxu0 0.0
        %706 = vmatpush1.xpose.msra.mxu0 0.0
        %707 = vmatprep.subr.mxu0 0.0
        %708 = vmatpush1.xpose.msra.mxu0 0.0
        %709 = vmatprep.subr.mxu0 0.0
        %710 = vmatpush1.xpose.msra.mxu0 0.0
        %711 = vmatprep.subr.mxu0 0.0
        %712 = vmatpush1.xpose.msra.mxu0 0.0
        %713 = vmatprep.subr.mxu0 0.0
        %714 = vmatpush1.xpose.msra.mxu0 0.0
        %715 = vmatprep.subr.mxu0 0.0
        %716 = vmatpush1.xpose.msra.mxu0 0.0
        %717 = vmatprep.subr.mxu0 0.0
        %718 = vmatpush1.xpose.msra.mxu0 0.0
        %719 = vmatprep.subr.mxu0 0.0
        %720 = vmatpush1.xpose.msra.mxu0 0.0
        %721 = vmatprep.subr.mxu0 0.0
        %722 = vmatpush1.xpose.msra.mxu0 0.0
        %723 = vmatprep.subr.mxu0 0.0
        %724 = vmatpush1.xpose.msra.mxu0 0.0
        %725 = vmatprep.subr.mxu0 0.0
        %726 = vmatpush1.xpose.msra.mxu0 0.0
        %727 = vmatprep.subr.mxu0 0.0
        %728 = vmatpush1.xpose.msra.mxu0 0.0
        %729 = vmatprep.subr.mxu0 0.0
        %730 = vmatpush1.xpose.msra.mxu0 0.0
        %731 = vmatprep.subr.mxu0 0.0
        %732 = vmatpush1.xpose.msra.mxu0 0.0
        %733 = vmatprep.subr.mxu0 0.0
        %734 = vmatpush1.xpose.msra.mxu0 0.0
        %735 = vmatprep.subr.mxu0 0.0
        %736 = vmatpush1.xpose.msra.mxu0 0.0
        %737 = vmatprep.subr.mxu0 0.0
        %738 = vmatpush1.xpose.msra.mxu0 0.0
        %739 = vmatprep.subr.mxu0 0.0
        %740 = vmatpush1.xpose.msra.mxu0 0.0
        %741 = vmatprep.subr.mxu0 0.0
        %742 = vmatpush1.xpose.msra.mxu0 0.0
        %743 = vmatprep.subr.mxu0 0.0
        %744 = vmatpush1.xpose.msra.mxu0 0.0
        %745 = vmatprep.subr.mxu0 0.0
        %746 = vmatpush1.xpose.msra.mxu0 0.0
        %747 = vmatprep.subr.mxu0 0.0
        %748 = vmatpush1.xpose.msra.mxu0 0.0
        %749 = vmatprep.subr.mxu0 0.0
        %750 = vmatpush1.xpose.msra.mxu0 0.0
        %751 = vmatprep.subr.mxu0 0.0
        %752 = vmatpush1.xpose.msra.mxu0 0.0
        %753 = vmatprep.subr.mxu0 0.0
        %754 = vmatpush1.xpose.msra.mxu0 0.0
        %755 = vmatprep.subr.mxu0 0.0
        %756 = vmatpush1.xpose.msra.mxu0 0.0
        %757 = vmatprep.subr.mxu0 0.0
        %758 = vmatpush1.xpose.msra.mxu0 0.0
        %759 = vmatprep.mubr.f32.mxu0 0.0
        %760 = vmatmul.mubr.f32.gmra.mrb[0].mxu0 %v691
        %v761 = vpop.f32.mrb[0].mxu0
        %v762 = vadd.f32 0.0, %v761
        %v763 = vpop.f32.mrb[0].mxu0
        %764 = vdwg.mxu0
        %v765 = vmul.f32 %v762, 0.35355338
        %v766 = vsel %vm358, %v765, -inf
        %767 = vmax.xlane.f32.xlu0 %v766
        %v768 = vpop.xlane.xlu0 %767
        %v769 = vsub.f32 %v765, %v768
        %v770 = vmul.f32 %v769, 1.442695
        %v771 = vpow.pop %v770
        %v772 = vsel %vm358, %v771, 0.0
        %773 = vadd.xlane.f32.xlu0 %v772
        %v774 = vpop.xlane.xlu0 %773
        %v775 = vrcp.pop %v774
        %v776 = vmul.f32 %v771, %v775
        %777 = vrot.lane.b32.xlu0 %v352, 48
        %v778 = vpop.permute.xlu0 %777
        %v781 = vsel %vm358, %v776, 0
        %783 = vmatprep.subr.mxu0 0.0
        %784 = vmatpush1.msra.mxu0 %v778
        %785 = vmatprep.subr.mxu0 0.0
        %786 = vmatpush1.msra.mxu0 0.0
        %787 = vmatprep.subr.mxu0 0.0
        %788 = vmatpush1.msra.mxu0 0.0
        %789 = vmatprep.subr.mxu0 0.0
        %790 = vmatpush1.msra.mxu0 0.0
        %791 = vmatprep.subr.mxu0 0.0
        %792 = vmatpush1.msra.mxu0 0.0
        %793 = vmatprep.subr.mxu0 0.0
        %794 = vmatpush1.msra.mxu0 0.0
        %795 = vmatprep.subr.mxu0 0.0
        %796 = vmatpush1.msra.mxu0 0.0
        %797 = vmatprep.subr.mxu0 0.0
        %798 = vmatpush1.msra.mxu0 0.0
        %799 = vmatprep.subr.mxu0 0.0
        %800 = vmatpush1.msra.mxu0 0.0
        %801 = vmatprep.subr.mxu0 0.0
        %802 = vmatpush1.msra.mxu0 0.0
        %803 = vmatprep.subr.mxu0 0.0
        %804 = vmatpush1.msra.mxu0 0.0
        %805 = vmatprep.subr.mxu0 0.0
        %806 = vmatpush1.msra.mxu0 0.0
        %807 = vmatprep.subr.mxu0 0.0
        %808 = vmatpush1.msra.mxu0 0.0
        %809 = vmatprep.subr.mxu0 0.0
        %810 = vmatpush1.msra.mxu0 0.0
        %811 = vmatprep.subr.mxu0 0.0
        %812 = vmatpush1.msra.mxu0 0.0
        %813 = vmatprep.subr.mxu0 0.0
        %814 = vmatpush1.msra.mxu0 0.0
        %815 = vmatprep.subr.mxu0 0.0
        %816 = vmatpush1.msra.mxu0 0.0
        %817 = vmatprep.subr.mxu0 0.0
        %818 = vmatpush1.msra.mxu0 0.0
        %819 = vmatprep.subr.mxu0 0.0
        %820 = vmatpush1.msra.mxu0 0.0
        %821 = vmatprep.subr.mxu0 0.0
        %822 = vmatpush1.msra.mxu0 0.0
        %823 = vmatprep.subr.mxu0 0.0
        %824 = vmatpush1.msra.mxu0 0.0
        %825 = vmatprep.subr.mxu0 0.0
        %826 = vmatpush1.msra.mxu0 0.0
        %827 = vmatprep.subr.mxu0 0.0
        %828 = vmatpush1.msra.mxu0 0.0
        %829 = vmatprep.subr.mxu0 0.0
        %830 = vmatpush1.msra.mxu0 0.0
        %831 = vmatprep.subr.mxu0 0.0
        %832 = vmatpush1.msra.mxu0 0.0
        %833 = vmatprep.subr.mxu0 0.0
        %834 = vmatpush1.msra.mxu0 0.0
        %835 = vmatprep.subr.mxu0 0.0
        %836 = vmatpush1.msra.mxu0 0.0
        %837 = vmatprep.subr.mxu0 0.0
        %838 = vmatpush1.msra.mxu0 0.0
        %839 = vmatprep.subr.mxu0 0.0
        %840 = vmatpush1.msra.mxu0 0.0
        %841 = vmatprep.subr.mxu0 0.0
        %842 = vmatpush1.msra.mxu0 0.0
        %843 = vmatprep.subr.mxu0 0.0
        %844 = vmatpush1.msra.mxu0 0.0
        %845 = vmatprep.subr.mxu0 0.0
        %846 = vmatpush1.msra.mxu0 0.0
        %847 = vmatprep.mubr.f32.mxu0 0.0
        %848 = vmatmul.mubr.f32.gmra.mrb[0].mxu0 %v781
        %v849 = vpop.f32.mrb[0].mxu0
        %v850 = vadd.f32 0.0, %v849
        %v851 = vpop.f32.mrb[0].mxu0
        %852 = vdwg.mxu0
        %853 = vrot.lane.b32.xlu0 %v352, 104
        %v854 = vpop.permute.xlu0 %853
        %855 = vrot.lane.b32.xlu0 %v352, 72
        %v856 = vpop.permute.xlu0 %855
        %v857 = vsel %vm358, %v854, 0
        %v859 = vsel %vm358, %v856, 0
        %861 = vmatprep.subr.mxu0 0.0
        %862 = vmatpush1.xpose.msra.mxu0 %v859
        %863 = vmatprep.subr.mxu0 0.0
        %864 = vmatpush1.xpose.msra.mxu0 0.0
        %865 = vmatprep.subr.mxu0 0.0
        %866 = vmatpush1.xpose.msra.mxu0 0.0
        %867 = vmatprep.subr.mxu0 0.0
        %868 = vmatpush1.xpose.msra.mxu0 0.0
        %869 = vmatprep.subr.mxu0 0.0
        %870 = vmatpush1.xpose.msra.mxu0 0.0
        %871 = vmatprep.subr.mxu0 0.0
        %872 = vmatpush1.xpose.msra.mxu0 0.0
        %873 = vmatprep.subr.mxu0 0.0
        %874 = vmatpush1.xpose.msra.mxu0 0.0
        %875 = vmatprep.subr.mxu0 0.0
        %876 = vmatpush1.xpose.msra.mxu0 0.0
        %877 = vmatprep.subr.mxu0 0.0
        %878 = vmatpush1.xpose.msra.mxu0 0.0
        %879 = vmatprep.subr.mxu0 0.0
        %880 = vmatpush1.xpose.msra.mxu0 0.0
        %881 = vmatprep.subr.mxu0 0.0
        %882 = vmatpush1.xpose.msra.mxu0 0.0
        %883 = vmatprep.subr.mxu0 0.0
        %884 = vmatpush1.xpose.msra.mxu0 0.0
        %885 = vmatprep.subr.mxu0 0.0
        %886 = vmatpush1.xpose.msra.mxu0 0.0
        %887 = vmatprep.subr.mxu0 0.0
        %888 = vmatpush1.xpose.msra.mxu0 0.0
        %889 = vmatprep.subr.mxu0 0.0
        %890 = vmatpush1.xpose.msra.mxu0 0.0
        %891 = vmatprep.subr.mxu0 0.0
        %892 = vmatpush1.xpose.msra.mxu0 0.0
        %893 = vmatprep.subr.mxu0 0.0
        %894 = vmatpush1.xpose.msra.mxu0 0.0
        %895 = vmatprep.subr.mxu0 0.0
        %896 = vmatpush1.xpose.msra.mxu0 0.0
        %897 = vmatprep.subr.mxu0 0.0
        %898 = vmatpush1.xpose.msra.mxu0 0.0
        %899 = vmatprep.subr.mxu0 0.0
        %900 = vmatpush1.xpose.msra.mxu0 0.0
        %901 = vmatprep.subr.mxu0 0.0
        %902 = vmatpush1.xpose.msra.mxu0 0.0
        %903 = vmatprep.subr.mxu0 0.0
        %904 = vmatpush1.xpose.msra.mxu0 0.0
        %905 = vmatprep.subr.mxu0 0.0
        %906 = vmatpush1.xpose.msra.mxu0 0.0
        %907 = vmatprep.subr.mxu0 0.0
        %908 = vmatpush1.xpose.msra.mxu0 0.0
        %909 = vmatprep.subr.mxu0 0.0
        %910 = vmatpush1.xpose.msra.mxu0 0.0
        %911 = vmatprep.subr.mxu0 0.0
        %912 = vmatpush1.xpose.msra.mxu0 0.0
        %913 = vmatprep.subr.mxu0 0.0
        %914 = vmatpush1.xpose.msra.mxu0 0.0
        %915 = vmatprep.subr.mxu0 0.0
        %916 = vmatpush1.xpose.msra.mxu0 0.0
        %917 = vmatprep.subr.mxu0 0.0
        %918 = vmatpush1.xpose.msra.mxu0 0.0
        %919 = vmatprep.subr.mxu0 0.0
        %920 = vmatpush1.xpose.msra.mxu0 0.0
        %921 = vmatprep.subr.mxu0 0.0
        %922 = vmatpush1.xpose.msra.mxu0 0.0
        %923 = vmatprep.subr.mxu0 0.0
        %924 = vmatpush1.xpose.msra.mxu0 0.0
        %925 = vmatprep.mubr.f32.mxu0 0.0
        %926 = vmatmul.mubr.f32.gmra.mrb[0].mxu0 %v857
        %v927 = vpop.f32.mrb[0].mxu0
        %v928 = vadd.f32 0.0, %v927
        %v929 = vpop.f32.mrb[0].mxu0
        %930 = vdwg.mxu0
        %v931 = vmul.f32 %v928, 0.35355338
        %v932 = vsel %vm358, %v931, -inf
        %933 = vmax.xlane.f32.xlu0 %v932
        %v934 = vpop.xlane.xlu0 %933
        %v935 = vsub.f32 %v931, %v934
        %v936 = vmul.f32 %v935, 1.442695
        %v937 = vpow.pop %v936
        %v938 = vsel %vm358, %v937, 0.0
        %939 = vadd.xlane.f32.xlu0 %v938
        %v940 = vpop.xlane.xlu0 %939
        %v941 = vrcp.pop %v940
        %v942 = vmul.f32 %v937, %v941
        %943 = vrot.lane.b32.xlu0 %v352, 40
        %v944 = vpop.permute.xlu0 %943
        %v947 = vsel %vm358, %v942, 0
        %949 = vmatprep.subr.mxu0 0.0
        %950 = vmatpush1.msra.mxu0 %v944
        %951 = vmatprep.subr.mxu0 0.0
        %952 = vmatpush1.msra.mxu0 0.0
        %953 = vmatprep.subr.mxu0 0.0
        %954 = vmatpush1.msra.mxu0 0.0
        %955 = vmatprep.subr.mxu0 0.0
        %956 = vmatpush1.msra.mxu0 0.0
        %957 = vmatprep.subr.mxu0 0.0
        %958 = vmatpush1.msra.mxu0 0.0
        %959 = vmatprep.subr.mxu0 0.0
        %960 = vmatpush1.msra.mxu0 0.0
        %961 = vmatprep.subr.mxu0 0.0
        %962 = vmatpush1.msra.mxu0 0.0
        %963 = vmatprep.subr.mxu0 0.0
        %964 = vmatpush1.msra.mxu0 0.0
        %965 = vmatprep.subr.mxu0 0.0
        %966 = vmatpush1.msra.mxu0 0.0
        %967 = vmatprep.subr.mxu0 0.0
        %968 = vmatpush1.msra.mxu0 0.0
        %969 = vmatprep.subr.mxu0 0.0
        %970 = vmatpush1.msra.mxu0 0.0
        %971 = vmatprep.subr.mxu0 0.0
        %972 = vmatpush1.msra.mxu0 0.0
        %973 = vmatprep.subr.mxu0 0.0
        %974 = vmatpush1.msra.mxu0 0.0
        %975 = vmatprep.subr.mxu0 0.0
        %976 = vmatpush1.msra.mxu0 0.0
        %977 = vmatprep.subr.mxu0 0.0
        %978 = vmatpush1.msra.mxu0 0.0
        %979 = vmatprep.subr.mxu0 0.0
        %980 = vmatpush1.msra.mxu0 0.0
        %981 = vmatprep.subr.mxu0 0.0
        %982 = vmatpush1.msra.mxu0 0.0
        %983 = vmatprep.subr.mxu0 0.0
        %984 = vmatpush1.msra.mxu0 0.0
        %985 = vmatprep.subr.mxu0 0.0
        %986 = vmatpush1.msra.mxu0 0.0
        %987 = vmatprep.subr.mxu0 0.0
        %988 = vmatpush1.msra.mxu0 0.0
        %989 = vmatprep.subr.mxu0 0.0
        %990 = vmatpush1.msra.mxu0 0.0
        %991 = vmatprep.subr.mxu0 0.0
        %992 = vmatpush1.msra.mxu0 0.0
        %993 = vmatprep.subr.mxu0 0.0
        %994 = vmatpush1.msra.mxu0 0.0
        %995 = vmatprep.subr.mxu0 0.0
        %996 = vmatpush1.msra.mxu0 0.0
        %997 = vmatprep.subr.mxu0 0.0
        %998 = vmatpush1.msra.mxu0 0.0
        %999 = vmatprep.subr.mxu0 0.0
        %1000 = vmatpush1.msra.mxu0 0.0
        %1001 = vmatprep.subr.mxu0 0.0
        %1002 = vmatpush1.msra.mxu0 0.0
        %1003 = vmatprep.subr.mxu0 0.0
        %1004 = vmatpush1.msra.mxu0 0.0
        %1005 = vmatprep.subr.mxu0 0.0
        %1006 = vmatpush1.msra.mxu0 0.0
        %1007 = vmatprep.subr.mxu0 0.0
        %1008 = vmatpush1.msra.mxu0 0.0
        %1009 = vmatprep.subr.mxu0 0.0
        %1010 = vmatpush1.msra.mxu0 0.0
        %1011 = vmatprep.subr.mxu0 0.0
        %1012 = vmatpush1.msra.mxu0 0.0
        %1013 = vmatprep.mubr.f32.mxu0 0.0
        %1014 = vmatmul.mubr.f32.gmra.mrb[0].mxu0 %v947
        %v1015 = vpop.f32.mrb[0].mxu0
        %v1016 = vadd.f32 0.0, %v1015
        %v1017 = vpop.f32.mrb[0].mxu0
        %1018 = vdwg.mxu0
        %1020 = vrot.lane.b32.xlu0 %v684, 8
        %v1021 = vpop.permute.xlu0 %1020
        %1024 = vrot.lane.b32.xlu0 %v850, 16
        %v1025 = vpop.permute.xlu0 %1024
        %1028 = vrot.lane.b32.xlu0 %v1016, 24
        %v1029 = vpop.permute.xlu0 %1028
        %v1031 = vsel %vm358, %v518, %v1021
        %vm1032 = vcmask 130048
        %v1033 = vsel %vm1032, %v1031, %v1025
        %vm1034 = vcmask 195584
        %v1035 = vsel %vm1034, %v1033, %v1029
        %v1036 = vld [vmem:[#allocation7] sm:$0xff]
        %v1037 = vld [vmem:[#allocation7 + $0x8] sm:$0xff]
        %v1038 = vld [vmem:[#allocation7 + $0x10] sm:$0xff]
        %v1039 = vld [vmem:[#allocation7 + $0x18] sm:$0xff]
        %v1040 = vld [vmem:[%s4] sm:$0x1]
        %v1042 = vlaneseq
        %v1043 = vshrl.u32 %v1042, 7
        %v1044 = vsub.s32 0, %v1043
        %v1045 = vrot.slane %v1040, %v1044
        %v1048 = vsel %vm281, %v1035, 0
        %1050 = vmatprep.subr.mxu0 0.0
        %1051 = vmatpush1.msra.mxu0 %v1036
        %1052 = vmatprep.subr.mxu0 0.0
        %1053 = vmatpush1.msra.mxu0 %v1037
        %1054 = vmatprep.subr.mxu0 0.0
        %1055 = vmatpush1.msra.mxu0 %v1038
        %1056 = vmatprep.subr.mxu0 0.0
        %1057 = vmatpush1.msra.mxu0 %v1039
        %1058 = vmatprep.subr.mxu0 0.0
        %1059 = vmatpush1.msra.mxu0 0.0
        %1060 = vmatprep.subr.mxu0 0.0
        %1061 = vmatpush1.msra.mxu0 0.0
        %1062 = vmatprep.subr.mxu0 0.0
        %1063 = vmatpush1.msra.mxu0 0.0
        %1064 = vmatprep.subr.mxu0 0.0
        %1065 = vmatpush1.msra.mxu0 0.0
        %1066 = vmatprep.subr.mxu0 0.0
        %1067 = vmatpush1.msra.mxu0 0.0
        %1068 = vmatprep.subr.mxu0 0.0
        %1069 = vmatpush1.msra.mxu0 0.0
        %1070 = vmatprep.subr.mxu0 0.0
        %1071 = vmatpush1.msra.mxu0 0.0
        %1072 = vmatprep.subr.mxu0 0.0
        %1073 = vmatpush1.msra.mxu0 0.0
        %1074 = vmatprep.subr.mxu0 0.0
        %1075 = vmatpush1.msra.mxu0 0.0
        %1076 = vmatprep.subr.mxu0 0.0
        %1077 = vmatpush1.msra.mxu0 0.0
        %1078 = vmatprep.subr.mxu0 0.0
        %1079 = vmatpush1.msra.mxu0 0.0
        %1080 = vmatprep.subr.mxu0 0.0
        %1081 = vmatpush1.msra.mxu0 0.0
        %1082 = vmatprep.subr.mxu0 0.0
        %1083 = vmatpush1.msra.mxu0 0.0
        %1084 = vmatprep.subr.mxu0 0.0
        %1085 = vmatpush1.msra.mxu0 0.0
        %1086 = vmatprep.subr.mxu0 0.0
        %1087 = vmatpush1.msra.mxu0 0.0
        %1088 = vmatprep.subr.mxu0 0.0
        %1089 = vmatpush1.msra.mxu0 0.0
        %1090 = vmatprep.subr.mxu0 0.0
        %1091 = vmatpush1.msra.mxu0 0.0
        %1092 = vmatprep.subr.mxu0 0.0
        %1093 = vmatpush1.msra.mxu0 0.0
        %1094 = vmatprep.subr.mxu0 0.0
        %1095 = vmatpush1.msra.mxu0 0.0
        %1096 = vmatprep.subr.mxu0 0.0
        %1097 = vmatpush1.msra.mxu0 0.0
        %1098 = vmatprep.subr.mxu0 0.0
        %1099 = vmatpush1.msra.mxu0 0.0
        %1100 = vmatprep.subr.mxu0 0.0
        %1101 = vmatpush1.msra.mxu0 0.0
        %1102 = vmatprep.subr.mxu0 0.0
        %1103 = vmatpush1.msra.mxu0 0.0
        %1104 = vmatprep.subr.mxu0 0.0
        %1105 = vmatpush1.msra.mxu0 0.0
        %1106 = vmatprep.subr.mxu0 0.0
        %1107 = vmatpush1.msra.mxu0 0.0
        %1108 = vmatprep.subr.mxu0 0.0
        %1109 = vmatpush1.msra.mxu0 0.0
        %1110 = vmatprep.subr.mxu0 0.0
        %1111 = vmatpush1.msra.mxu0 0.0
        %1112 = vmatprep.subr.mxu0 0.0
        %1113 = vmatpush1.msra.mxu0 0.0
        %1114 = vmatprep.mubr.f32.mxu0 0.0
        %1115 = vmatmul.mubr.f32.gmra.mrb[0].mxu0 %v1048
        %v1116 = vpop.f32.mrb[0].mxu0
        %v1117 = vadd.f32 %v1045, %v1116
        %v1118 = vpop.f32.mrb[0].mxu0
        %1119 = vdwg.mxu0
        %1120 = vst.msk [vmem:[%s268] sm:$0xff] %vm281, %v1117
        %s1121 = sand.u32 %s141, 1
        %s1122 = scalar_lea.sflag [#allocation4], %s1121
        %s1123 = sand.u32 %s141, 1
        %s1124 = smul.addr %s1123, 8
        %s1125 = scalar_lea.vmem [#allocation8], %s1124
        // Predicated region
        $region53: #{tpu_custom_call.1} parent=39 // pred_check
          %p1126 = pneg %p151
        $region54: #{tpu_custom_call.1} parent=39 // pred_check_branch
          %1128 = sbr.rel (%p1126) target = $region56
        $region55: #{tpu_custom_call.1} parent=39 // pred_region
          %s1130 = ssub.s32 128, 128
          %1131 = vsyncadd %s1122, %s1130
          %s1132 = smul.addr %s23, 128
          %s1133 = scalar_lea.hbm %s5, %s1132
          %s1135 = sshll.u32 %s1125, 4
          %s1136 = int_to_ptr.vmem [resolvable:$true] %s1135
          %1138 = dma.vmem_to_hbm [thread:$0]  %s1136, 128, %s1133, %s1122
        $region56: #{tpu_custom_call.1} parent=39 // pred_fallthru
          _
      $region40: #{tpu_custom_call.1} parent=5 // pred_fallthru
        _
      %p1139 = scmp.le.s32.totalorder 2, %s18
      // Predicated region
      $region57: #{tpu_custom_call.1} parent=5 // pred_check
        %p1140 = pneg %p1139
      $region58: #{tpu_custom_call.1} parent=5 // pred_check_branch
        %1142 = sbr.rel (%p1140) target = $region60
      $region59: #{tpu_custom_call.1} parent=5 // pred_region
        %s1143 = ssub.s32 %s18, 2
        // Predicated region
        $region61: #{tpu_custom_call.1} parent=59 // pred_check
          %p1144 = pneg %p157
        $region62: #{tpu_custom_call.1} parent=59 // pred_check_branch
          %1146 = sbr.rel (%p1144) target = $region64
        $region63: #{tpu_custom_call.1} parent=59 // pred_region
          %s1147 = sand.u32 %s142, 1
          %s1148 = scalar_lea.sflag [#allocation4], %s1147
          %s1149 = sand.u32 %s142, 1
          %s1150 = smul.addr %s1149, 8
          %s1151 = scalar_lea.vmem [#allocation8], %s1150
          %1152 = dma.done %s1148, 128
        $region64: #{tpu_custom_call.1} parent=59 // pred_fallthru
          _
      $region60: #{tpu_custom_call.1} parent=5 // pred_fallthru
        _
    $region6: #{tpu_custom_call.1} parent=1 // loop_footer
      %s22 = sadd.s32 1, %s18
    $region7: #{tpu_custom_call.1} parent=1 // loop_footer_branch
      %17 = sbr.rel target = $region3
    $region8: #{tpu_custom_call.1} parent=1 // loop_exit
      _
    %1153 = vsyncpa [#allocation3], 1
    %s1154 = scalar_lea.sflag [#allocation3], 1
    %1155 = vsyncpa %s1154, 1
    %1156 = vsyncpa [#allocation6], 1
    %1157 = vsyncpa [#allocation4], 1
    %s1158 = scalar_lea.sflag [#allocation4], 1
    %1159 = vsyncpa %s1158, 1

</llo_original>
